<compile_context>
chip_gen: v7x
topology: tpu7x:2x2x1
jax: 0.10.0
libtpu: 0.0.40
codegen_flags: <defaults>
</compile_context>

<pallas_src>
import jax
import jax.numpy as jnp
from jax.experimental import pallas as pl
from jax.experimental.pallas import tpu as pltpu


# ---------------------------------------------------------------------------
# Shared-range-reduction sin/cos (VPU-only: mul/add/floor/convert/select).
# Cody-Waite 3-term split of pi/2 (exact-in-f32 leading terms) + Cephes sinf /
# cosf polynomials on |r| <= pi/4.  Accurate to a few 1e-7 for |x| up to ~1e4.
# ---------------------------------------------------------------------------
_INV_PIO2 = 0.6366197723675814          # 2 / pi
_PIO2_HI = 1.5703125                    # exact in f32
_PIO2_MID = 4.837512969970703125e-4     # exact in f32
_PIO2_LO = 7.54978995489188216e-8
_S1, _S2, _S3 = -1.6666654611e-1, 8.3321608736e-3, -1.9515295891e-4
_C2, _C4, _C6 = 4.166664568298827e-2, -1.388731625493765e-3, 2.443315711809948e-5


def _sincos(x):
    """Return (sin(x), cos(x)) with one shared range reduction (f32 VPU ops)."""
    k = jnp.floor(x * _INV_PIO2 + 0.5)                    # nearest multiple of pi/2
    ki = k.astype(jnp.int32)
    r = ((x - k * _PIO2_HI) - k * _PIO2_MID) - k * _PIO2_LO
    z = r * r
    sin_r = ((_S3 * z + _S2) * z + _S1) * z * r + r
    cos_r = ((_C6 * z + _C4) * z + _C2) * z * z - 0.5 * z + 1.0
    swap = (ki & 1) == 1                                   # odd quadrant -> swap
    s = jnp.where(swap, cos_r, sin_r)
    c = jnp.where(swap, sin_r, cos_r)
    s = jnp.where((ki & 2) == 2, -s, s)                    # quadrants 2,3: sin < 0
    c = jnp.where(((ki + 1) & 2) == 2, -c, c)              # quadrants 1,2: cos < 0
    return s, c


def _rope_kernel(inv_freq_ref, pos_ref, cos_ref, sin_ref):
    # inv_freq_ref: (1, half)   f32
    # pos_ref:      (TS, 1)     int32  (rows on sublanes -> lane broadcast)
    # cos_ref/sin_ref: (TS, dim)
    half = inv_freq_ref.shape[1]

    pos = pos_ref[...].astype(jnp.float32)                 # (TS, 1)
    freqs = pos * inv_freq_ref[...]                        # (TS, half) f32, VPU only

    # One shared range reduction for both sin and cos, on the half width only
    # (both halves of the concatenated emb are identical).
    s, c = _sincos(freqs)
    c = c.astype(cos_ref.dtype)
    s = s.astype(sin_ref.dtype)

    if half % 128 == 0:
        # Lane-dense, unmasked half-width stores (each a multiple of 128 lanes).
        cos_ref[:, :half] = c
        cos_ref[:, half:] = c
        sin_ref[:, :half] = s
        sin_ref[:, half:] = s
    else:
        # Small head dims: concat the *results* once so each store is a single
        # full-width (dim-lane) store instead of two masked sub-128 stores.
        cos_ref[...] = jnp.concatenate([c, c], axis=-1)
        sin_ref[...] = jnp.concatenate([s, s], axis=-1)


def _select_row_tile(rows, dim, half, out_itemsize, max_tile=4096):
    """Largest row tile (multiple of 8, <= max_tile) fitting a ~28 MiB budget."""

    def vmem_est(t):
        out_b = 2 * 2 * t * dim * out_itemsize   # cos + sin, double-buffered
        pos_b = 2 * t * 128 * 4                  # lane-padded (t, 1) pos, 2 buffers
        tmp_b = 6 * t * half * 4                 # in-kernel f32 temporaries
        return out_b + pos_b + tmp_b

    budget = 28 * 1024 * 1024
    ts = max_tile
    while ts > 8 and vmem_est(ts) > budget:
        ts //= 2
    if ts >= rows:
        return rows            # single / full-extent block
    return ts                  # power of two >= 8 -> sublane-aligned


def gemma2_rotary_embedding(position_ids, inv_freq, out_dtype, *, seq_tile=None):
    """position_ids: (B, S) int; inv_freq: (dim//2,) f32.  Returns (cos, sin): (B, S, dim)."""
    B, S = position_ids.shape
    half = inv_freq.shape[0]
    dim = 2 * half
    rows = B * S
    out_itemsize = jnp.dtype(out_dtype).itemsize

    if seq_tile is None:
        ts = _select_row_tile(rows, dim, half, out_itemsize)
    else:
        ts = min(rows, seq_tile)
        if ts < rows:
            ts = max(8, (ts // 8) * 8)
    n_tiles = pl.cdiv(rows, ts)

    # Rows on the sublane axis: (rows, 1) int32, blocked (ts, 1).
    pos2 = position_ids.astype(jnp.int32).reshape(rows, 1)
    inv_freq2 = inv_freq.astype(jnp.float32).reshape(1, half)

    out_shape = (
        jax.ShapeDtypeStruct((rows, dim), out_dtype),
        jax.ShapeDtypeStruct((rows, dim), out_dtype),
    )

    grid_spec = pltpu.PrefetchScalarGridSpec(
        num_scalar_prefetch=0,
        grid=(n_tiles,),
        in_specs=[
            pl.BlockSpec((1, half), lambda i: (0, 0)),   # inv_freq (shared)
            pl.BlockSpec((ts, 1), lambda i: (i, 0)),     # position_ids row tile
        ],
        out_specs=[
            pl.BlockSpec((ts, dim), lambda i: (i, 0)),   # cos tile
            pl.BlockSpec((ts, dim), lambda i: (i, 0)),   # sin tile
        ],
    )

    out_bytes = 2 * rows * dim * out_itemsize
    in_bytes = rows * 4 + half * 4
    cost = pl.CostEstimate(
        flops=rows * half * 32,          # outer product + shared reduction + 2 polys
        transcendentals=0,               # sin/cos are inlined VPU polynomials
        bytes_accessed=out_bytes + in_bytes,
    )

    cos, sin = pl.pallas_call(
        _rope_kernel,
        out_shape=out_shape,
        grid_spec=grid_spec,
        compiler_params=pltpu.CompilerParams(
            dimension_semantics=("parallel",),
            vmem_limit_bytes=40 * 1024 * 1024,   # > per-step budget; safe on v5e/v6e/v7x
        ),
        cost_estimate=cost,
    )(inv_freq2, pos2)

    return cos.reshape(B, S, dim), sin.reshape(B, S, dim)


def make_inv_freq(dim, base=10000.0):
    # Deterministic parameter setup, identical to the module's __init__
    # (int64 arange in torch; values are small so f32 arange is exact).
    exponent = jnp.arange(0, dim, 2, dtype=jnp.float32) / dim
    return 1.0 / (base ** exponent)


def reference(position_ids, inv_freq, out_dtype):
    pos = position_ids.astype(jnp.float32)                       # (B, S)
    freqs = pos[:, :, None] * inv_freq[None, None, :]            # (B, S, half)
    emb = jnp.concatenate([freqs, freqs], axis=-1)               # (B, S, dim)
    return jnp.cos(emb).astype(out_dtype), jnp.sin(emb).astype(out_dtype)


if __name__ == "__main__":
    key = jax.random.PRNGKey(0)
    B, S, dim = 2, 8, 32
    x_dtype = jnp.float32   # dtype of the hidden-states tensor `x` in the module

    # x is only used for dtype/device in the torch module; build it anyway.
    k1, k2 = jax.random.split(key)
    x = jax.random.normal(k1, (B, S, dim), dtype=x_dtype)
    position_ids = jax.random.randint(k2, (B, S), 0, 2048, dtype=jnp.int32)

    inv_freq = make_inv_freq(dim, base=10000.0)

    cos, sin = gemma2_rotary_embedding(position_ids, inv_freq, x.dtype)
    jax.block_until_ready((cos, sin))

    cos_ref, sin_ref = reference(position_ids, inv_freq, x.dtype)
    assert cos.shape == (B, S, dim) and sin.shape == (B, S, dim)
    assert cos.dtype == x.dtype and sin.dtype == x.dtype
    assert jnp.allclose(cos, cos_ref, atol=1e-5, rtol=1e-5)
    assert jnp.allclose(sin, sin_ref, atol=1e-5, rtol=1e-5)

    print("KERNEL_OK")
</pallas_src>

<mosaic_0001>
module attributes {stable_mosaic.version = 11 : i64} {
  func.func @_rope_kernel(%arg0: i32, %arg1: memref<1x16xf32, #tpu.memory_space<vmem>>, %arg2: memref<16x1xi32, #tpu.memory_space<vmem>>, %arg3: memref<16x32xf32, #tpu.memory_space<vmem>>, %arg4: memref<16x32xf32, #tpu.memory_space<vmem>>) attributes {dimension_semantics = [#tpu.dimension_semantics<parallel>], iteration_bounds = array<i64: 1>, scalar_prefetch = 0 : i64, scratch_operands = 0 : i64, tpu.core_type = #tpu.core_type<tc>, window_params = [{pipeline_mode = #tpu.pipeline_mode<synchronous>, transform_indices = @transform_0, window_bounds = array<i64: 1, 16>}, {transform_indices = @transform_1, window_bounds = array<i64: 16, 1>}, {transform_indices = @transform_2, window_bounds = array<i64: 16, 32>}, {transform_indices = @transform_3, window_bounds = array<i64: 16, 32>}]} {
    %c0 = arith.constant 0 : index
    %c0_0 = arith.constant 0 : index
    %0 = vector.load %arg2[%c0, %c0_0] : memref<16x1xi32, #tpu.memory_space<vmem>>, vector<16x1xi32>
    %1 = arith.sitofp %0 : vector<16x1xi32> to vector<16x1xf32>
    %c0_1 = arith.constant 0 : index
    %c0_2 = arith.constant 0 : index
    %2 = vector.load %arg1[%c0_1, %c0_2] : memref<1x16xf32, #tpu.memory_space<vmem>>, vector<1x16xf32>
    %3 = vector.broadcast %1 : vector<16x1xf32> to vector<16x16xf32>
    %4 = vector.broadcast %2 : vector<1x16xf32> to vector<16x16xf32>
    %5 = arith.mulf %3, %4 : vector<16x16xf32>
    %cst = arith.constant 0.636619746 : f32
    %6 = vector.broadcast %cst : f32 to vector<16x16xf32>
    %7 = arith.mulf %5, %6 : vector<16x16xf32>
    %cst_3 = arith.constant 5.000000e-01 : f32
    %8 = vector.broadcast %cst_3 : f32 to vector<16x16xf32>
    %9 = arith.addf %7, %8 : vector<16x16xf32>
    %10 = math.floor %9 : vector<16x16xf32>
    %11 = arith.fptosi %10 : vector<16x16xf32> to vector<16x16xi32>
    %cst_4 = arith.constant 1.5703125 : f32
    %12 = vector.broadcast %cst_4 : f32 to vector<16x16xf32>
    %13 = arith.mulf %10, %12 : vector<16x16xf32>
    %14 = arith.subf %5, %13 : vector<16x16xf32>
    %cst_5 = arith.constant 4.83751297E-4 : f32
    %15 = vector.broadcast %cst_5 : f32 to vector<16x16xf32>
    %16 = arith.mulf %10, %15 : vector<16x16xf32>
    %17 = arith.subf %14, %16 : vector<16x16xf32>
    %cst_6 = arith.constant 7.549790e-08 : f32
    %18 = vector.broadcast %cst_6 : f32 to vector<16x16xf32>
    %19 = arith.mulf %10, %18 : vector<16x16xf32>
    %20 = arith.subf %17, %19 : vector<16x16xf32>
    %21 = arith.mulf %20, %20 : vector<16x16xf32>
    %cst_7 = arith.constant -1.95152956E-4 : f32
    %22 = vector.broadcast %cst_7 : f32 to vector<16x16xf32>
    %23 = arith.mulf %22, %21 : vector<16x16xf32>
    %cst_8 = arith.constant 0.00833216123 : f32
    %24 = vector.broadcast %cst_8 : f32 to vector<16x16xf32>
    %25 = arith.addf %23, %24 : vector<16x16xf32>
    %26 = arith.mulf %25, %21 : vector<16x16xf32>
    %cst_9 = arith.constant -0.166666552 : f32
    %27 = vector.broadcast %cst_9 : f32 to vector<16x16xf32>
    %28 = arith.addf %26, %27 : vector<16x16xf32>
    %29 = arith.mulf %28, %21 : vector<16x16xf32>
    %30 = arith.mulf %29, %20 : vector<16x16xf32>
    %31 = arith.addf %30, %20 : vector<16x16xf32>
    %cst_10 = arith.constant 2.44331568E-5 : f32
    %32 = vector.broadcast %cst_10 : f32 to vector<16x16xf32>
    %33 = arith.mulf %32, %21 : vector<16x16xf32>
    %cst_11 = arith.constant -0.00138873165 : f32
    %34 = vector.broadcast %cst_11 : f32 to vector<16x16xf32>
    %35 = arith.addf %33, %34 : vector<16x16xf32>
    %36 = arith.mulf %35, %21 : vector<16x16xf32>
    %cst_12 = arith.constant 0.0416666456 : f32
    %37 = vector.broadcast %cst_12 : f32 to vector<16x16xf32>
    %38 = arith.addf %36, %37 : vector<16x16xf32>
    %39 = arith.mulf %38, %21 : vector<16x16xf32>
    %40 = arith.mulf %39, %21 : vector<16x16xf32>
    %cst_13 = arith.constant 5.000000e-01 : f32
    %41 = vector.broadcast %cst_13 : f32 to vector<16x16xf32>
    %42 = arith.mulf %41, %21 : vector<16x16xf32>
    %43 = arith.subf %40, %42 : vector<16x16xf32>
    %cst_14 = arith.constant 1.000000e+00 : f32
    %44 = vector.broadcast %cst_14 : f32 to vector<16x16xf32>
    %45 = arith.addf %43, %44 : vector<16x16xf32>
    %c1_i32 = arith.constant 1 : i32
    %46 = vector.broadcast %c1_i32 : i32 to vector<16x16xi32>
    %47 = arith.andi %11, %46 : vector<16x16xi32>
    %c1_i32_15 = arith.constant 1 : i32
    %48 = vector.broadcast %c1_i32_15 : i32 to vector<16x16xi32>
    %49 = arith.cmpi eq, %47, %48 : vector<16x16xi32>
    %50 = arith.select %49, %45, %31 : vector<16x16xi1>, vector<16x16xf32>
    %51 = arith.select %49, %31, %45 : vector<16x16xi1>, vector<16x16xf32>
    %c2_i32 = arith.constant 2 : i32
    %52 = vector.broadcast %c2_i32 : i32 to vector<16x16xi32>
    %53 = arith.andi %11, %52 : vector<16x16xi32>
    %c2_i32_16 = arith.constant 2 : i32
    %54 = vector.broadcast %c2_i32_16 : i32 to vector<16x16xi32>
    %55 = arith.cmpi eq, %53, %54 : vector<16x16xi32>
    %cst_17 = arith.constant 0.000000e+00 : f32
    %56 = vector.broadcast %cst_17 : f32 to vector<16x16xf32>
    %57 = arith.subf %56, %50 : vector<16x16xf32>
    %58 = arith.select %55, %57, %50 : vector<16x16xi1>, vector<16x16xf32>
    %c1_i32_18 = arith.constant 1 : i32
    %59 = vector.broadcast %c1_i32_18 : i32 to vector<16x16xi32>
    %60 = arith.addi %11, %59 : vector<16x16xi32>
    %c2_i32_19 = arith.constant 2 : i32
    %61 = vector.broadcast %c2_i32_19 : i32 to vector<16x16xi32>
    %62 = arith.andi %60, %61 : vector<16x16xi32>
    %c2_i32_20 = arith.constant 2 : i32
    %63 = vector.broadcast %c2_i32_20 : i32 to vector<16x16xi32>
    %64 = arith.cmpi eq, %62, %63 : vector<16x16xi32>
    %cst_21 = arith.constant 0.000000e+00 : f32
    %65 = vector.broadcast %cst_21 : f32 to vector<16x16xf32>
    %66 = arith.subf %65, %51 : vector<16x16xf32>
    %67 = arith.select %64, %66, %51 : vector<16x16xi1>, vector<16x16xf32>
    %68 = tpu.concatenate %67, %67 in 1 : vector<16x16xf32>, vector<16x16xf32> -> vector<16x32xf32>
    %c0_22 = arith.constant 0 : index
    %c0_23 = arith.constant 0 : index
    %69 = vector.load %arg3[%c0_22, %c0_23] : memref<16x32xf32, #tpu.memory_space<vmem>>, vector<16x32xf32>
    tpu.vector_store %arg3[%c0_22, %c0_23], %68 {strides = array<i32>} : memref<16x32xf32, #tpu.memory_space<vmem>>, vector<16x32xf32>,
    %70 = tpu.concatenate %58, %58 in 1 : vector<16x16xf32>, vector<16x16xf32> -> vector<16x32xf32>
    %c0_24 = arith.constant 0 : index
    %c0_25 = arith.constant 0 : index
    %71 = vector.load %arg4[%c0_24, %c0_25] : memref<16x32xf32, #tpu.memory_space<vmem>>, vector<16x32xf32>
    tpu.vector_store %arg4[%c0_24, %c0_25], %70 {strides = array<i32>} : memref<16x32xf32, #tpu.memory_space<vmem>>, vector<16x32xf32>,
    return
  }
  func.func @transform_0(%arg0: i32) -> (i32, i32) {
    %c0_i32 = arith.constant 0 : i32
    %c0_i32_0 = arith.constant 0 : i32
    %c0_i32_1 = arith.constant 0 : i32
    return %c0_i32, %c0_i32_0 : i32, i32
  }
  func.func @transform_1(%arg0: i32) -> (i32, i32) {
    %c0_i32 = arith.constant 0 : i32
    %c0_i32_0 = arith.constant 0 : i32
    return %arg0, %c0_i32 : i32, i32
  }
  func.func @transform_2(%arg0: i32) -> (i32, i32) {
    %c0_i32 = arith.constant 0 : i32
    %c0_i32_0 = arith.constant 0 : i32
    return %arg0, %c0_i32 : i32, i32
  }
  func.func @transform_3(%arg0: i32) -> (i32, i32) {
    %c0_i32 = arith.constant 0 : i32
    %c0_i32_0 = arith.constant 0 : i32
    return %arg0, %c0_i32 : i32, i32
  }
}

</mosaic_0001>

<llo_original>
// kernel: tpu_custom_call.1
$region0: #{tpu_custom_call.1}
  #allocation0 [shape = 'u32[]', space=smem, size = 0x4, offset = 0x4, fixed_abs, tag = 'smem constant byte address 0x4 - core index']
  #allocation1 [shape = 'u32[144,128]{1,0:T(1,128)}', space=vmem, size = 0x12000, scoped, tag = 'internal scratch']
  %s0 = inlined_call_operand.vmem [shape: f32[1,16], index: 0, kind: input, shape index: {}]
  %s1 = inlined_call_operand.vmem [shape: s32[16,1], index: 1, kind: input, shape index: {}]
  %s2 = inlined_call_operand.hbm [shape: f32[16,32], index: 2, kind: output, shape index: {0}]
  %s3 = inlined_call_operand.hbm [shape: f32[16,32], index: 3, kind: output, shape index: {1}]
  %4 = xla_tuple %s2, %s3
  %s5 = sld [smem:[#allocation0]]
  $region26: #{tpu_custom_call.1} parent=0
    _
  %s7 = ssub.s32 1, %s5
  %s8 = scalar_select 0, %s7, %s5
  $region1: #{tpu_custom_call.1} parent=0
    #allocation2 [shape = 'u8[8192]{0}', space=vmem, size = 0x2000, scoped, tag = 'output window, operand 0, single buffered']
    #allocation3 [shape = 's32[1]{0}', space=sflag, size = 0x4, scoped, tag = 'scoped memory for tpu_custom_call.1']
    #allocation4 [shape = 'u8[8192]{0}', space=vmem, size = 0x2000, scoped, tag = 'output window, operand 1, single buffered']
    #allocation5 [shape = 's32[1]{0}', space=sflag, size = 0x4, scoped, tag = 'scoped memory for tpu_custom_call.1']
    %9 = vsyncpa [#allocation3], 0
    %10 = vsyncpa [#allocation5], 0
    // Predicated region
    $region2: #{tpu_custom_call.1} parent=1 // pred_check
      _
    $region3: #{tpu_custom_call.1} parent=1 // pred_check_branch
      %12 = sbr.rel (0) target = $region5
    $region4: #{tpu_custom_call.1} parent=1 // pred_region
      _
    $region5: #{tpu_custom_call.1} parent=1 // pred_fallthru
      _
    // Predicated region
    $region6: #{tpu_custom_call.1} parent=1 // pred_check
      _
    $region7: #{tpu_custom_call.1} parent=1 // pred_check_branch
      %14 = sbr.rel (0) target = $region9
    $region8: #{tpu_custom_call.1} parent=1 // pred_region
      _
    $region9: #{tpu_custom_call.1} parent=1 // pred_fallthru
      _
    %v15 = vld [vmem:[%s1] sm:$0xff]
    %v16 = vld [vmem:[%s1 + $0x8] sm:$0xff]
    %v17 = vcvt.s32.f32 %v15
    %v18 = vcvt.s32.f32 %v16
    %v19 = vld [vmem:[%s0] sm:$0x1]
    %21 = vset.pattern.permute.xlu0 0
    %22 = vperm.xlu0 %21, %v17
    %v23 = vpop.permute.xlu0 %22
    %26 = vset.pattern.permute.xlu0 0
    %27 = vperm.xlu0 %26, %v18
    %v28 = vpop.permute.xlu0 %27
    %v31 = vlaneseq
    %v32 = vshrl.u32 %v31, 7
    %v33 = vsub.s32 0, %v32
    %v34 = vrot.slane %v19, %v33
    %v36 = vmul.f32 %v23, %v34
    %v37 = vmul.f32 %v28, %v34
    %v38 = vmul.f32 %v36, 0.63661975
    %v39 = vmul.f32 %v37, 0.63661975
    %v40 = vadd.f32 %v38, 0.5
    %v41 = vadd.f32 %v39, 0.5
    %v42 = vfloor.f32 %v40
    %v43 = vfloor.f32 %v41
    %v44 = vcvt.f32.s32.to.zero.pseudo %v42
    %v45 = vcvt.f32.s32.to.zero.pseudo %v43
    %v46 = vmul.f32 %v42, 1.5703125
    %v47 = vmul.f32 %v43, 1.5703125
    %v48 = vsub.f32 %v36, %v46
    %v49 = vsub.f32 %v37, %v47
    %v50 = vmul.f32 %v42, 0.0004837513
    %v51 = vmul.f32 %v43, 0.0004837513
    %v52 = vsub.f32 %v48, %v50
    %v53 = vsub.f32 %v49, %v51
    %v54 = vmul.f32 %v42, 7.54979e-08
    %v55 = vmul.f32 %v43, 7.54979e-08
    %v56 = vsub.f32 %v52, %v54
    %v57 = vsub.f32 %v53, %v55
    %v58 = vmul.f32 %v56, %v56
    %v59 = vmul.f32 %v57, %v57
    %v60 = vmul.f32 %v58, -0.00019515296
    %v61 = vmul.f32 %v59, -0.00019515296
    %v62 = vadd.f32 %v60, 0.008332161
    %v63 = vadd.f32 %v61, 0.008332161
    %v64 = vmul.f32 %v62, %v58
    %v65 = vmul.f32 %v63, %v59
    %v66 = vadd.f32 %v64, -0.16666655
    %v67 = vadd.f32 %v65, -0.16666655
    %v68 = vmul.f32 %v66, %v58
    %v69 = vmul.f32 %v67, %v59
    %v70 = vmul.f32 %v68, %v56
    %v71 = vmul.f32 %v69, %v57
    %v72 = vadd.f32 %v70, %v56
    %v73 = vadd.f32 %v71, %v57
    %v74 = vmul.f32 %v58, 2.4433157e-05
    %v75 = vmul.f32 %v59, 2.4433157e-05
    %v76 = vadd.f32 %v74, -0.0013887316
    %v77 = vadd.f32 %v75, -0.0013887316
    %v78 = vmul.f32 %v76, %v58
    %v79 = vmul.f32 %v77, %v59
    %v80 = vadd.f32 %v78, 0.041666646
    %v81 = vadd.f32 %v79, 0.041666646
    %v82 = vmul.f32 %v80, %v58
    %v83 = vmul.f32 %v81, %v59
    %v84 = vmul.f32 %v82, %v58
    %v85 = vmul.f32 %v83, %v59
    %v86 = vmul.f32 %v58, 0.5
    %v87 = vmul.f32 %v59, 0.5
    %v88 = vsub.f32 %v84, %v86
    %v89 = vsub.f32 %v85, %v87
    %v90 = vadd.f32 %v88, 1.0
    %v91 = vadd.f32 %v89, 1.0
    %v92 = vand.u32 %v44, 1
    %v93 = vand.u32 %v45, 1
    %vm94 = vcmp.eq.s32.totalorder %v92, 1
    %vm95 = vcmp.eq.s32.totalorder %v93, 1
    %v96 = vsel %vm94, %v90, %v72
    %v97 = vsel %vm95, %v91, %v73
    %v98 = vsel %vm94, %v72, %v90
    %v99 = vsel %vm95, %v73, %v91
    %v100 = vand.u32 %v44, 2
    %v101 = vand.u32 %v45, 2
    %vm102 = vcmp.eq.s32.totalorder %v100, 2
    %vm103 = vcmp.eq.s32.totalorder %v101, 2
    %v104 = vsub.f32 0.0, %v96
    %v105 = vsub.f32 0.0, %v97
    %v106 = vsel %vm102, %v104, %v96
    %v107 = vsel %vm103, %v105, %v97
    %v108 = vadd.s32 %v44, 1
    %v109 = vadd.s32 %v45, 1
    %v110 = vand.u32 %v108, 2
    %v111 = vand.u32 %v109, 2
    %vm112 = vcmp.eq.s32.totalorder %v110, 2
    %vm113 = vcmp.eq.s32.totalorder %v111, 2
    %v114 = vsub.f32 0.0, %v98
    %v115 = vsub.f32 0.0, %v99
    %v116 = vsel %vm112, %v114, %v98
    %v117 = vsel %vm113, %v115, %v99
    %120 = vrot.lane.b32.xlu0 %v116, 16
    %v121 = vpop.permute.xlu0 %120
    %122 = vrot.lane.b32.xlu0 %v117, 16
    %v123 = vpop.permute.xlu0 %122
    %vm126 = vcmask 130048
    %v127 = vsel %vm126, %v116, %v121
    %v128 = vsel %vm126, %v117, %v123
    %vm129 = vcmask 261120
    %130 = vst.msk [vmem:[#allocation2] sm:$0xff] %vm129, %v127
    %131 = vst.msk [vmem:[#allocation2 + $0x8] sm:$0xff] %vm129, %v128
    %134 = vrot.lane.b32.xlu0 %v106, 16
    %v135 = vpop.permute.xlu0 %134
    %136 = vrot.lane.b32.xlu0 %v107, 16
    %v137 = vpop.permute.xlu0 %136
    %v140 = vsel %vm126, %v106, %v135
    %v141 = vsel %vm126, %v107, %v137
    %142 = vst.msk [vmem:[#allocation4] sm:$0xff] %vm129, %v140
    %143 = vst.msk [vmem:[#allocation4 + $0x8] sm:$0xff] %vm129, %v141
    // Predicated region
    $region10: #{tpu_custom_call.1} parent=1 // pred_check
      _
    $region11: #{tpu_custom_call.1} parent=1 // pred_check_branch
      %145 = sbr.rel (0) target = $region13
    $region12: #{tpu_custom_call.1} parent=1 // pred_region
      %s147 = ssub.s32 256, 256
      %148 = vsyncadd [#allocation3], %s147
      %s149 = sshll.u32 [#allocation2], 4
      %s150 = int_to_ptr.vmem [resolvable:$true] %s149
      %155 = dma.vmem_to_hbm [thread:$0]  %s150, 256, %s2, [#allocation3], 128, 128, 8
    $region13: #{tpu_custom_call.1} parent=1 // pred_fallthru
      _
    // Predicated region
    $region14: #{tpu_custom_call.1} parent=1 // pred_check
      _
    $region15: #{tpu_custom_call.1} parent=1 // pred_check_branch
      %157 = sbr.rel (0) target = $region17
    $region16: #{tpu_custom_call.1} parent=1 // pred_region
      %s159 = ssub.s32 256, 256
      %160 = vsyncadd [#allocation5], %s159
      %s161 = sshll.u32 [#allocation4], 4
      %s162 = int_to_ptr.vmem [resolvable:$true] %s161
      %167 = dma.vmem_to_hbm [thread:$0]  %s162, 256, %s3, [#allocation5], 128, 128, 8
    $region17: #{tpu_custom_call.1} parent=1 // pred_fallthru
      _
    // Predicated region
    $region18: #{tpu_custom_call.1} parent=1 // pred_check
      _
    $region19: #{tpu_custom_call.1} parent=1 // pred_check_branch
      %169 = sbr.rel (0) target = $region21
    $region20: #{tpu_custom_call.1} parent=1 // pred_region
      %170 = dma.done [#allocation3], 256
    $region21: #{tpu_custom_call.1} parent=1 // pred_fallthru
      _
    // Predicated region
    $region22: #{tpu_custom_call.1} parent=1 // pred_check
      _
    $region23: #{tpu_custom_call.1} parent=1 // pred_check_branch
      %172 = sbr.rel (0) target = $region25
    $region24: #{tpu_custom_call.1} parent=1 // pred_region
      %173 = dma.done [#allocation5], 256
    $region25: #{tpu_custom_call.1} parent=1 // pred_fallthru
      _
    %174 = vsyncpa [#allocation3], 1
    %175 = vsyncpa [#allocation5], 1

</llo_original>
